<compile_context>
chip_gen: v7x
topology: tpu7x:2x2x1
jax: 0.10.0
libtpu: 0.0.40
codegen_flags: <defaults>
</compile_context>

<pallas_src>
import numpy as np
import jax
import jax.numpy as jnp
from jax import lax
from jax.experimental import pallas as pl
from jax.experimental.pallas import tpu as pltpu

_DEFAULT_MEAN = (0.0, 0.0, 0.0, 0.0)
_DEFAULT_STD = (0.1, 0.1, 0.2, 0.2)


def _make_kernel(apply_shift):
    """Kernel factory; `apply_shift` is a compile-time bool (mean != 0)."""

    def kernel(scale_ref, sign_ref, *rest):
        if apply_shift:
            shift_ref, boxes_ref, deltas_ref, out_ref = rest
        else:
            shift_ref = None
            boxes_ref, deltas_ref, out_ref = rest

        # Blocks of the flat [x1,y1,x2,y2, x1,y1,x2,y2, ...] stream.
        # Compute in f32 regardless of input dtype (bf16 inputs are upcast).
        b = boxes_ref[...].astype(jnp.float32)
        d = deltas_ref[...].astype(jnp.float32)
        bc = b.shape[-1]

        # Lane-parity mask: True on the x1/y1 lanes (lane % 4 in {0,1}) of
        # each 4-lane anchor group.  Requires bc % 4 == 0 and anchor-aligned
        # block lane offsets (asserted in the wrapper) so that the roll
        # wraparound lanes below are always masked out by this select.
        lane = lax.broadcasted_iota(jnp.int32, b.shape, dimension=1)
        is_lo = (lane & 2) == 0

        # Scaled deltas (dx,dy,dw,dh interleaved per lane).
        d_s = d * scale_ref[...]
        if apply_shift:
            d_s = d_s + shift_ref[...]

        # Decode the coordinate interleave with 4 *independent* XLU rolls:
        #   roll(x, bc-2)[l] = x[l+2]   (lo lane reads its hi partner)
        #   roll(x, 2)[l]    = x[l-2]   (hi lane reads its lo partner)
        b_hi = jnp.where(is_lo, pltpu.roll(b, shift=bc - 2, axis=1), b)   # x2/y2 on every lane
        b_lo = jnp.where(is_lo, b, pltpu.roll(b, shift=2, axis=1))        # x1/y1 on every lane
        size = b_hi - b_lo                                                # W / H on every lane
        ctr = b_lo + 0.5 * size                                           # ctr_x / ctr_y

        d_ctr = jnp.where(is_lo, d_s, pltpu.roll(d_s, shift=2, axis=1))   # dx / dy on every lane
        d_size = jnp.where(is_lo, pltpu.roll(d_s, shift=bc - 2, axis=1), d_s)  # dw / dh

        # x1/y1 lanes: ctr + (d - 0.5*exp(dsz)) * size
        # x2/y2 lanes: ctr + (d + 0.5*exp(dsz)) * size
        # (sign_ref is the tiled [-0.5,-0.5,+0.5,+0.5] lane vector; exp -> EUP)
        out = ctr + (d_ctr + sign_ref[...] * jnp.exp(d_size)) * size
        out_ref[...] = out.astype(out_ref.dtype)

    return kernel


def _lane_view(L):
    """Lane-dense 2-D view of the flat (L,) stream: (rows, cols, pad).

    Prefers a free (zero-copy) fold to 512/256/128 lanes; otherwise pads the
    stream to the next multiple of 128 (pad is a multiple of 4, so anchor
    groups stay lane-aligned) and folds that.
    """
    for lw in (512, 256, 128):
        if L % lw == 0:
            return L // lw, lw, 0
    pad = (-L) % 128
    Lp = L + pad
    for lw in (512, 256, 128):
        if Lp % lw == 0:
            return Lp // lw, lw, pad
    raise AssertionError("unreachable")


def bbox_transform(boxes, deltas, mean=None, std=None, *, block_rows=1024):
    """EfficientDet BBoxTransform.forward: boxes, deltas (B,N,4) -> (B,N,4)."""
    B, N, C = boxes.shape
    assert C == 4 and deltas.shape == boxes.shape
    dtype = boxes.dtype

    # mean/std are module buffers -> compile-time constants here.
    mean4 = np.asarray(_DEFAULT_MEAN if mean is None else mean,
                       dtype=np.float32).reshape(4)
    std4 = np.asarray(_DEFAULT_STD if std is None else std,
                      dtype=np.float32).reshape(4)
    apply_shift = bool(np.any(mean4 != 0.0))

    # Lane-dense 2-D view of the flat coordinate stream (zero-copy when the
    # total length folds cleanly; one cheap zero-pad otherwise).
    L = B * N * 4
    rows, cols, pad = _lane_view(L)
    assert cols % 4 == 0 and pad % 4 == 0, "anchor groups must stay lane-aligned"

    flat_b = boxes.reshape(L)
    flat_d = deltas.reshape(L)
    if pad:
        flat_b = jnp.pad(flat_b, (0, pad))   # zeros: exp(0)=1, no inf/NaN noise
        flat_d = jnp.pad(flat_d, (0, pad))
    boxes2 = flat_b.reshape(rows, cols)
    deltas2 = flat_d.reshape(rows, cols)

    # Row-block size: as large as fits the smallest scoped-VMEM budget
    # (1024x512 f32: 3 streams x 2 buffers = 12 MiB < 16 MiB on v5e), but keep
    # >= 4 row blocks for big inputs so the pipeline overlaps DMA with compute
    # and v7x megacore gets work on both TensorCores.
    block_rows = max(8, (block_rows // 8) * 8)
    br = rows if rows <= 8 else min(block_rows, (rows // 8) * 8)
    if rows >= 1024:
        br = min(br, max(256, ((pl.cdiv(rows, 4) + 7) // 8) * 8))
    bc = cols   # cols is always 128/256/512 -> single lane block, lane-dense stores

    # Per-lane constants tiled to the x1,y1,x2,y2 / dx,dy,dw,dh interleave
    # (always f32 -- internal compute is f32 even for bf16 inputs).
    reps = bc // 4
    scale_row = jnp.asarray(np.tile(std4, reps).reshape(1, bc), jnp.float32)
    sign_row = jnp.asarray(
        np.tile(np.array([-0.5, -0.5, 0.5, 0.5], np.float32), reps).reshape(1, bc),
        jnp.float32)

    data_spec = pl.BlockSpec((br, bc), lambda i: (i, 0))
    const_spec = pl.BlockSpec((1, bc), lambda i: (0, 0))

    inputs = [scale_row, sign_row]
    in_specs = [const_spec, const_spec]
    if apply_shift:
        shift_row = jnp.asarray(np.tile(mean4, reps).reshape(1, bc), jnp.float32)
        inputs.append(shift_row)
        in_specs.append(const_spec)
    inputs += [boxes2, deltas2]
    in_specs += [data_spec, data_spec]

    itemsize = int(np.dtype(dtype).itemsize)
    out2 = pl.pallas_call(
        _make_kernel(apply_shift),
        out_shape=jax.ShapeDtypeStruct((rows, cols), dtype),
        grid=(pl.cdiv(rows, br),),
        in_specs=in_specs,
        out_specs=data_spec,
        compiler_params=pltpu.CompilerParams(
            dimension_semantics=("parallel",)),
        cost_estimate=pl.CostEstimate(
            flops=12 * L, transcendentals=L, bytes_accessed=3 * L * itemsize),
    )(*inputs)

    out_flat = out2.reshape(rows * cols)
    if pad:
        out_flat = out_flat[:L]
    return out_flat.reshape(B, N, 4)


def _reference(boxes, deltas, mean, std):
    widths = boxes[:, :, 2] - boxes[:, :, 0]
    heights = boxes[:, :, 3] - boxes[:, :, 1]
    ctr_x = boxes[:, :, 0] + 0.5 * widths
    ctr_y = boxes[:, :, 1] + 0.5 * heights
    dx = deltas[:, :, 0] * std[0] + mean[0]
    dy = deltas[:, :, 1] * std[1] + mean[1]
    dw = deltas[:, :, 2] * std[2] + mean[2]
    dh = deltas[:, :, 3] * std[3] + mean[3]
    pred_ctr_x = ctr_x + dx * widths
    pred_ctr_y = ctr_y + dy * heights
    pred_w = jnp.exp(dw) * widths
    pred_h = jnp.exp(dh) * heights
    return jnp.stack(
        [pred_ctr_x - 0.5 * pred_w, pred_ctr_y - 0.5 * pred_h,
         pred_ctr_x + 0.5 * pred_w, pred_ctr_y + 0.5 * pred_h], axis=2)


if __name__ == "__main__":
    key = jax.random.PRNGKey(0)

    def make_case(k, B, N):
        kb, kw, kd = jax.random.split(k, 3)
        xy = jax.random.uniform(kb, (B, N, 2), jnp.float32, 0.0, 50.0)
        wh = jax.random.uniform(kw, (B, N, 2), jnp.float32, 1.0, 30.0)
        boxes = jnp.concatenate([xy, xy + wh], axis=2)   # valid x2>x1, y2>y1
        deltas = jax.random.normal(kd, (B, N, 4), jnp.float32)
        return boxes, deltas

    k1, k2, k3 = jax.random.split(key, 3)

    # Case 1: clean zero-copy fold into a (rows, 512) lane-dense view.
    boxes1, deltas1 = make_case(k1, 2, 256)
    out1 = jax.block_until_ready(bbox_transform(boxes1, deltas1))
    ref1 = _reference(boxes1, deltas1, _DEFAULT_MEAN, _DEFAULT_STD)
    assert out1.shape == (2, 256, 4)
    assert jnp.allclose(out1, ref1, atol=2e-3, rtol=1e-4), "case 1 mismatch"

    # Case 2: ragged anchor count -> padded lane-dense view (no masked stores).
    boxes2, deltas2 = make_case(k2, 2, 40)
    out2 = jax.block_until_ready(bbox_transform(boxes2, deltas2))
    ref2 = _reference(boxes2, deltas2, _DEFAULT_MEAN, _DEFAULT_STD)
    assert out2.shape == (2, 40, 4)
    assert jnp.allclose(out2, ref2, atol=2e-3, rtol=1e-4), "case 2 mismatch"

    # Case 3: non-default (non-zero) mean/std exercises the shift path.
    boxes3, deltas3 = make_case(k3, 1, 96)
    mean3 = (0.05, -0.02, 0.1, 0.03)
    std3 = (0.2, 0.2, 0.1, 0.1)
    out3 = jax.block_until_ready(bbox_transform(boxes3, deltas3, mean3, std3))
    ref3 = _reference(boxes3, deltas3, mean3, std3)
    assert out3.shape == (1, 96, 4)
    assert jnp.allclose(out3, ref3, atol=2e-3, rtol=1e-4), "case 3 mismatch"

    print("KERNEL_OK")
</pallas_src>

<mosaic_0001>
module attributes {stable_mosaic.version = 11 : i64} {
  func.func @kernel(%arg0: i32, %arg1: memref<1x512xf32, #tpu.memory_space<vmem>>, %arg2: memref<1x512xf32, #tpu.memory_space<vmem>>, %arg3: memref<4x512xf32, #tpu.memory_space<vmem>>, %arg4: memref<4x512xf32, #tpu.memory_space<vmem>>, %arg5: memref<4x512xf32, #tpu.memory_space<vmem>>) attributes {dimension_semantics = [#tpu.dimension_semantics<parallel>], iteration_bounds = array<i64: 1>, scalar_prefetch = 0 : i64, scratch_operands = 0 : i64, tpu.core_type = #tpu.core_type<tc>, window_params = [{pipeline_mode = #tpu.pipeline_mode<synchronous>, transform_indices = @transform_0, window_bounds = array<i64: 1, 512>}, {pipeline_mode = #tpu.pipeline_mode<synchronous>, transform_indices = @transform_1, window_bounds = array<i64: 1, 512>}, {transform_indices = @transform_2, window_bounds = array<i64: 4, 512>}, {transform_indices = @transform_3, window_bounds = array<i64: 4, 512>}, {transform_indices = @transform_4, window_bounds = array<i64: 4, 512>}]} {
    %c0 = arith.constant 0 : index
    %c0_0 = arith.constant 0 : index
    %0 = vector.load %arg3[%c0, %c0_0] : memref<4x512xf32, #tpu.memory_space<vmem>>, vector<4x512xf32>
    %c0_1 = arith.constant 0 : index
    %c0_2 = arith.constant 0 : index
    %1 = vector.load %arg4[%c0_1, %c0_2] : memref<4x512xf32, #tpu.memory_space<vmem>>, vector<4x512xf32>
    %2 = tpu.iota {dimensions = array<i32: 1>} : vector<4x512xi32>
    %c2_i32 = arith.constant 2 : i32
    %3 = vector.broadcast %c2_i32 : i32 to vector<4x512xi32>
    %4 = arith.andi %2, %3 : vector<4x512xi32>
    %c0_i32 = arith.constant 0 : i32
    %5 = vector.broadcast %c0_i32 : i32 to vector<4x512xi32>
    %6 = arith.cmpi eq, %4, %5 : vector<4x512xi32>
    %c0_3 = arith.constant 0 : index
    %c0_4 = arith.constant 0 : index
    %7 = vector.load %arg1[%c0_3, %c0_4] : memref<1x512xf32, #tpu.memory_space<vmem>>, vector<1x512xf32>
    %8 = vector.broadcast %7 : vector<1x512xf32> to vector<4x512xf32>
    %9 = arith.mulf %1, %8 : vector<4x512xf32>
    %c510_i32 = arith.constant 510 : i32
    %10 = tpu.dynamic_rotate %0 by %c510_i32 dim 1 : vector<4x512xf32>, i32 -> vector<4x512xf32>
    %11 = arith.select %6, %10, %0 : vector<4x512xi1>, vector<4x512xf32>
    %c2_i32_5 = arith.constant 2 : i32
    %12 = tpu.dynamic_rotate %0 by %c2_i32_5 dim 1 : vector<4x512xf32>, i32 -> vector<4x512xf32>
    %13 = arith.select %6, %0, %12 : vector<4x512xi1>, vector<4x512xf32>
    %14 = arith.subf %11, %13 : vector<4x512xf32>
    %cst = arith.constant 5.000000e-01 : f32
    %15 = vector.broadcast %cst : f32 to vector<4x512xf32>
    %16 = arith.mulf %15, %14 : vector<4x512xf32>
    %17 = arith.addf %13, %16 : vector<4x512xf32>
    %c2_i32_6 = arith.constant 2 : i32
    %18 = tpu.dynamic_rotate %9 by %c2_i32_6 dim 1 : vector<4x512xf32>, i32 -> vector<4x512xf32>
    %19 = arith.select %6, %9, %18 : vector<4x512xi1>, vector<4x512xf32>
    %c510_i32_7 = arith.constant 510 : i32
    %20 = tpu.dynamic_rotate %9 by %c510_i32_7 dim 1 : vector<4x512xf32>, i32 -> vector<4x512xf32>
    %21 = arith.select %6, %20, %9 : vector<4x512xi1>, vector<4x512xf32>
    %c0_8 = arith.constant 0 : index
    %c0_9 = arith.constant 0 : index
    %22 = vector.load %arg2[%c0_8, %c0_9] : memref<1x512xf32, #tpu.memory_space<vmem>>, vector<1x512xf32>
    %23 = math.exp %21 : vector<4x512xf32>
    %24 = vector.broadcast %22 : vector<1x512xf32> to vector<4x512xf32>
    %25 = arith.mulf %24, %23 : vector<4x512xf32>
    %26 = arith.addf %19, %25 : vector<4x512xf32>
    %27 = arith.mulf %26, %14 : vector<4x512xf32>
    %28 = arith.addf %17, %27 : vector<4x512xf32>
    %c0_10 = arith.constant 0 : index
    %c0_11 = arith.constant 0 : index
    %29 = vector.load %arg5[%c0_10, %c0_11] : memref<4x512xf32, #tpu.memory_space<vmem>>, vector<4x512xf32>
    tpu.vector_store %arg5[%c0_10, %c0_11], %28 {strides = array<i32>} : memref<4x512xf32, #tpu.memory_space<vmem>>, vector<4x512xf32>,
    return
  }
  func.func @transform_0(%arg0: i32) -> (i32, i32) {
    %c0_i32 = arith.constant 0 : i32
    %c0_i32_0 = arith.constant 0 : i32
    %c0_i32_1 = arith.constant 0 : i32
    return %c0_i32, %c0_i32_0 : i32, i32
  }
  func.func @transform_1(%arg0: i32) -> (i32, i32) {
    %c0_i32 = arith.constant 0 : i32
    %c0_i32_0 = arith.constant 0 : i32
    %c0_i32_1 = arith.constant 0 : i32
    return %c0_i32, %c0_i32_0 : i32, i32
  }
  func.func @transform_2(%arg0: i32) -> (i32, i32) {
    %c0_i32 = arith.constant 0 : i32
    %c0_i32_0 = arith.constant 0 : i32
    return %arg0, %c0_i32 : i32, i32
  }
  func.func @transform_3(%arg0: i32) -> (i32, i32) {
    %c0_i32 = arith.constant 0 : i32
    %c0_i32_0 = arith.constant 0 : i32
    return %arg0, %c0_i32 : i32, i32
  }
  func.func @transform_4(%arg0: i32) -> (i32, i32) {
    %c0_i32 = arith.constant 0 : i32
    %c0_i32_0 = arith.constant 0 : i32
    return %arg0, %c0_i32 : i32, i32
  }
}

</mosaic_0001>

<llo_original>
// kernel: tpu_custom_call.1
$region0: #{tpu_custom_call.1}
  #allocation0 [shape = 'u32[]', space=smem, size = 0x4, offset = 0x4, fixed_abs, tag = 'smem constant byte address 0x4 - core index']
  #allocation1 [shape = 'u32[144,128]{1,0:T(1,128)}', space=vmem, size = 0x12000, scoped, tag = 'internal scratch']
  %s0 = inlined_call_operand.hbm [shape: f32[1,512], index: 0, kind: input, shape index: {}]
  %s1 = inlined_call_operand.hbm [shape: f32[1,512], index: 1, kind: input, shape index: {}]
  %s2 = inlined_call_operand.hbm [shape: f32[4,512], index: 2, kind: input, shape index: {}]
  %s3 = inlined_call_operand.hbm [shape: f32[4,512], index: 3, kind: input, shape index: {}]
  %s4 = inlined_call_operand.hbm [shape: f32[4,512], index: 4, kind: output, shape index: {}]
  %s5 = sld [smem:[#allocation0]]
  $region42: #{tpu_custom_call.1} parent=0
    _
  %s7 = ssub.s32 1, %s5
  %s8 = scalar_select 0, %s7, %s5
  $region1: #{tpu_custom_call.1} parent=0
    #allocation2 [shape = 'u8[2048]{0}', space=vmem, size = 0x800, scoped, tag = 'input window, operand 0, single buffered']
    #allocation3 [shape = 's32[1]{0}', space=sflag, size = 0x4, scoped, tag = 'scoped memory for tpu_custom_call.1']
    #allocation4 [shape = 's32[1]{0}', space=sflag, size = 0x4, scoped, tag = 'scoped memory for tpu_custom_call.1']
    #allocation5 [shape = 'u8[2048]{0}', space=vmem, size = 0x800, scoped, tag = 'input window, operand 1, single buffered']
    #allocation6 [shape = 's32[1]{0}', space=sflag, size = 0x4, scoped, tag = 'scoped memory for tpu_custom_call.1']
    #allocation7 [shape = 'u8[8192]{0}', space=vmem, size = 0x2000, scoped, tag = 'input window, operand 2, single buffered']
    #allocation8 [shape = 'u8[8192]{0}', space=vmem, size = 0x2000, scoped, tag = 'input window, operand 3, single buffered']
    #allocation9 [shape = 's32[1]{0}', space=sflag, size = 0x4, scoped, tag = 'scoped memory for tpu_custom_call.1']
    #allocation10 [shape = 'u8[8192]{0}', space=vmem, size = 0x2000, scoped, tag = 'output window, operand 0, single buffered']
    %9 = vsyncpa [#allocation3], 0
    %10 = vsyncpa [#allocation6], 0
    %11 = vsyncpa [#allocation9], 0
    %12 = vsyncpa [#allocation4], 0
    // Predicated region
    $region2: #{tpu_custom_call.1} parent=1 // pred_check
      _
    $region3: #{tpu_custom_call.1} parent=1 // pred_check_branch
      %14 = sbr.rel (0) target = $region5
    $region4: #{tpu_custom_call.1} parent=1 // pred_region
      %s16 = ssub.s32 64, 64
      %17 = vsyncadd [#allocation3], %s16
      %s19 = sshll.u32 [#allocation2], 4
      %s20 = int_to_ptr.vmem [resolvable:$true] %s19
      %22 = dma.hbm_to_vmem [thread:$0]  %s0, 64, %s20, [#allocation3]
    $region5: #{tpu_custom_call.1} parent=1 // pred_fallthru
      _
    // Predicated region
    $region6: #{tpu_custom_call.1} parent=1 // pred_check
      _
    $region7: #{tpu_custom_call.1} parent=1 // pred_check_branch
      %24 = sbr.rel (0) target = $region9
    $region8: #{tpu_custom_call.1} parent=1 // pred_region
      %s26 = ssub.s32 64, 64
      %27 = vsyncadd [#allocation6], %s26
      %s29 = sshll.u32 [#allocation5], 4
      %s30 = int_to_ptr.vmem [resolvable:$true] %s29
      %32 = dma.hbm_to_vmem [thread:$0]  %s1, 64, %s30, [#allocation6]
    $region9: #{tpu_custom_call.1} parent=1 // pred_fallthru
      _
    // Predicated region
    $region10: #{tpu_custom_call.1} parent=1 // pred_check
      _
    $region11: #{tpu_custom_call.1} parent=1 // pred_check_branch
      %34 = sbr.rel (0) target = $region13
    $region12: #{tpu_custom_call.1} parent=1 // pred_region
      %s36 = ssub.s32 256, 256
      %37 = vsyncadd [#allocation6], %s36
      %s39 = sshll.u32 [#allocation7], 4
      %s40 = int_to_ptr.vmem [resolvable:$true] %s39
      %42 = dma.hbm_to_vmem [thread:$0]  %s2, 256, %s40, [#allocation6]
    $region13: #{tpu_custom_call.1} parent=1 // pred_fallthru
      _
    // Predicated region
    $region14: #{tpu_custom_call.1} parent=1 // pred_check
      _
    $region15: #{tpu_custom_call.1} parent=1 // pred_check_branch
      %44 = sbr.rel (0) target = $region17
    $region16: #{tpu_custom_call.1} parent=1 // pred_region
      %s46 = ssub.s32 256, 256
      %47 = vsyncadd [#allocation9], %s46
      %s49 = sshll.u32 [#allocation8], 4
      %s50 = int_to_ptr.vmem [resolvable:$true] %s49
      %52 = dma.hbm_to_vmem [thread:$0]  %s3, 256, %s50, [#allocation9]
    $region17: #{tpu_custom_call.1} parent=1 // pred_fallthru
      _
    // Predicated region
    $region18: #{tpu_custom_call.1} parent=1 // pred_check
      _
    $region19: #{tpu_custom_call.1} parent=1 // pred_check_branch
      %54 = sbr.rel (0) target = $region21
    $region20: #{tpu_custom_call.1} parent=1 // pred_region
      %55 = dma.done [#allocation3], 64
    $region21: #{tpu_custom_call.1} parent=1 // pred_fallthru
      _
    // Predicated region
    $region22: #{tpu_custom_call.1} parent=1 // pred_check
      _
    $region23: #{tpu_custom_call.1} parent=1 // pred_check_branch
      %57 = sbr.rel (0) target = $region25
    $region24: #{tpu_custom_call.1} parent=1 // pred_region
      %58 = dma.done [#allocation6], 64
    $region25: #{tpu_custom_call.1} parent=1 // pred_fallthru
      _
    // Predicated region
    $region26: #{tpu_custom_call.1} parent=1 // pred_check
      _
    $region27: #{tpu_custom_call.1} parent=1 // pred_check_branch
      %60 = sbr.rel (0) target = $region29
    $region28: #{tpu_custom_call.1} parent=1 // pred_region
      %61 = dma.done [#allocation6], 256
    $region29: #{tpu_custom_call.1} parent=1 // pred_fallthru
      _
    // Predicated region
    $region30: #{tpu_custom_call.1} parent=1 // pred_check
      _
    $region31: #{tpu_custom_call.1} parent=1 // pred_check_branch
      %63 = sbr.rel (0) target = $region33
    $region32: #{tpu_custom_call.1} parent=1 // pred_region
      %64 = dma.done [#allocation9], 256
    $region33: #{tpu_custom_call.1} parent=1 // pred_fallthru
      _
    %v65 = vld [vmem:[#allocation7] sm:$0xff]
    %v66 = vld [vmem:[#allocation7 + $0x8] sm:$0xff]
    %v67 = vld [vmem:[#allocation8] sm:$0xff]
    %v68 = vld [vmem:[#allocation8 + $0x8] sm:$0xff]
    %v69 = vlaneseq
    %v70 = vand.u32 %v69, 127
    %v71 = vadd.s32 %v70, 128
    %v72 = vadd.s32 %v70, 256
    %v73 = vadd.s32 %v70, 384
    %v74 = vand.u32 %v70, 2
    %v75 = vand.u32 %v71, 2
    %v76 = vand.u32 %v72, 2
    %v77 = vand.u32 %v73, 2
    %vm78 = vcmp.eq.s32.totalorder %v74, 0
    %vm79 = vcmp.eq.s32.totalorder %v75, 0
    %vm80 = vcmp.eq.s32.totalorder %v76, 0
    %vm81 = vcmp.eq.s32.totalorder %v77, 0
    %v82 = vld [vmem:[#allocation2] sm:$0xf]
    %v84 = vlaneseq
    %v85 = vshrl.u32 %v84, 7
    %v86 = vsub.s32 0, %v85
    %v87 = vrot.slane %v82, %v86
    %v88 = vlaneseq
    %v89 = vshrl.u32 %v88, 7
    %v90 = vsub.s32 1, %v89
    %v91 = vrot.slane %v82, %v90
    %v92 = vlaneseq
    %v93 = vshrl.u32 %v92, 7
    %v94 = vsub.s32 2, %v93
    %v95 = vrot.slane %v82, %v94
    %v96 = vlaneseq
    %v97 = vshrl.u32 %v96, 7
    %v98 = vsub.s32 3, %v97
    %v99 = vrot.slane %v82, %v98
    %v100 = vcombine.low %v87, %v91
    %v101 = vcombine.low %v95, %v99
    %v104 = vmul.f32 %v67, %v100
    %v105 = vmul.f32 %v68, %v101
    %v108 = vcombine.high %v65, %v65
    %v109 = vcombine.high %v66, %v66
    %112 = vrot.lane.b32.xlu0 %v65, 126
    %v113 = vpop.permute.xlu0 %112
    %114 = vrot.lane.b32.xlu0 %v108, 126
    %v115 = vpop.permute.xlu0 %114
    %116 = vrot.lane.b32.xlu0 %v66, 126
    %v117 = vpop.permute.xlu0 %116
    %118 = vrot.lane.b32.xlu0 %v109, 126
    %v119 = vpop.permute.xlu0 %118
    %vm120 = vcmp.lt.s32.totalorder %v70, 126
    %v121 = vsel %vm120, %v117, %v119
    %v122 = vsel %vm120, %v115, %v117
    %v123 = vsel %vm120, %v113, %v115
    %v124 = vsel %vm120, %v119, %v113
    %v125 = vsel %vm78, %v123, %v65
    %v126 = vsel %vm79, %v122, %v108
    %v127 = vsel %vm80, %v121, %v66
    %v128 = vsel %vm81, %v124, %v109
    %129 = vrot.lane.b32.xlu0 %v65, 2
    %v130 = vpop.permute.xlu0 %129
    %131 = vrot.lane.b32.xlu0 %v108, 2
    %v132 = vpop.permute.xlu0 %131
    %133 = vrot.lane.b32.xlu0 %v66, 2
    %v134 = vpop.permute.xlu0 %133
    %135 = vrot.lane.b32.xlu0 %v109, 2
    %v136 = vpop.permute.xlu0 %135
    %vm137 = vcmp.lt.s32.totalorder %v70, 2
    %v138 = vsel %vm137, %v134, %v136
    %v139 = vsel %vm137, %v132, %v134
    %v140 = vsel %vm137, %v130, %v132
    %v141 = vsel %vm137, %v136, %v130
    %v142 = vsel %vm78, %v65, %v141
    %v143 = vsel %vm79, %v108, %v140
    %v144 = vsel %vm80, %v66, %v139
    %v145 = vsel %vm81, %v109, %v138
    %v146 = vsub.f32 %v125, %v142
    %v147 = vsub.f32 %v126, %v143
    %v148 = vsub.f32 %v127, %v144
    %v149 = vsub.f32 %v128, %v145
    %v150 = vmul.f32 %v146, 0.5
    %v151 = vmul.f32 %v147, 0.5
    %v152 = vmul.f32 %v148, 0.5
    %v153 = vmul.f32 %v149, 0.5
    %v154 = vadd.f32 %v142, %v150
    %v155 = vadd.f32 %v143, %v151
    %v156 = vadd.f32 %v144, %v152
    %v157 = vadd.f32 %v145, %v153
    %v160 = vcombine.high %v104, %v104
    %v161 = vcombine.high %v105, %v105
    %164 = vrot.lane.b32.xlu0 %v104, 2
    %v165 = vpop.permute.xlu0 %164
    %166 = vrot.lane.b32.xlu0 %v160, 2
    %v167 = vpop.permute.xlu0 %166
    %168 = vrot.lane.b32.xlu0 %v105, 2
    %v169 = vpop.permute.xlu0 %168
    %170 = vrot.lane.b32.xlu0 %v161, 2
    %v171 = vpop.permute.xlu0 %170
    %v172 = vsel %vm137, %v169, %v171
    %v173 = vsel %vm137, %v167, %v169
    %v174 = vsel %vm137, %v165, %v167
    %v175 = vsel %vm137, %v171, %v165
    %v176 = vsel %vm78, %v104, %v175
    %v177 = vsel %vm79, %v160, %v174
    %v178 = vsel %vm80, %v105, %v173
    %v179 = vsel %vm81, %v161, %v172
    %180 = vrot.lane.b32.xlu0 %v104, 126
    %v181 = vpop.permute.xlu0 %180
    %182 = vrot.lane.b32.xlu0 %v160, 126
    %v183 = vpop.permute.xlu0 %182
    %184 = vrot.lane.b32.xlu0 %v105, 126
    %v185 = vpop.permute.xlu0 %184
    %186 = vrot.lane.b32.xlu0 %v161, 126
    %v187 = vpop.permute.xlu0 %186
    %v188 = vsel %vm120, %v185, %v187
    %v189 = vsel %vm120, %v183, %v185
    %v190 = vsel %vm120, %v181, %v183
    %v191 = vsel %vm120, %v187, %v181
    %v192 = vsel %vm78, %v190, %v104
    %v193 = vsel %vm79, %v189, %v160
    %v194 = vsel %vm80, %v188, %v105
    %v195 = vsel %vm81, %v191, %v161
    %v196 = vld [vmem:[#allocation5] sm:$0xf]
    %v197 = vmul.f32 %v192, 1.442695
    %v198 = vpow.pop %v197
    %v199 = vmul.f32 %v193, 1.442695
    %v200 = vpow.pop %v199
    %v201 = vmul.f32 %v194, 1.442695
    %v202 = vpow.pop %v201
    %v203 = vmul.f32 %v195, 1.442695
    %v204 = vpow.pop %v203
    %v206 = vlaneseq
    %v207 = vshrl.u32 %v206, 7
    %v208 = vsub.s32 0, %v207
    %v209 = vrot.slane %v196, %v208
    %v210 = vlaneseq
    %v211 = vshrl.u32 %v210, 7
    %v212 = vsub.s32 1, %v211
    %v213 = vrot.slane %v196, %v212
    %v214 = vlaneseq
    %v215 = vshrl.u32 %v214, 7
    %v216 = vsub.s32 2, %v215
    %v217 = vrot.slane %v196, %v216
    %v218 = vlaneseq
    %v219 = vshrl.u32 %v218, 7
    %v220 = vsub.s32 3, %v219
    %v221 = vrot.slane %v196, %v220
    %v226 = vmul.f32 %v209, %v198
    %v227 = vmul.f32 %v213, %v200
    %v228 = vmul.f32 %v217, %v202
    %v229 = vmul.f32 %v221, %v204
    %v230 = vadd.f32 %v176, %v226
    %v231 = vadd.f32 %v177, %v227
    %v232 = vadd.f32 %v178, %v228
    %v233 = vadd.f32 %v179, %v229
    %v234 = vmul.f32 %v230, %v146
    %v235 = vmul.f32 %v231, %v147
    %v236 = vmul.f32 %v232, %v148
    %v237 = vmul.f32 %v233, %v149
    %v238 = vadd.f32 %v154, %v234
    %v239 = vadd.f32 %v155, %v235
    %v240 = vadd.f32 %v156, %v236
    %v241 = vadd.f32 %v157, %v237
    %v246 = vcombine.low %v238, %v239
    %v247 = vcombine.low %v240, %v241
    %250 = vst [vmem:[#allocation10] sm:$0xff] %v246
    %251 = vst [vmem:[#allocation10 + $0x8] sm:$0xff] %v247
    // Predicated region
    $region34: #{tpu_custom_call.1} parent=1 // pred_check
      _
    $region35: #{tpu_custom_call.1} parent=1 // pred_check_branch
      %253 = sbr.rel (0) target = $region37
    $region36: #{tpu_custom_call.1} parent=1 // pred_region
      %s255 = ssub.s32 256, 256
      %256 = vsyncadd [#allocation4], %s255
      %s258 = sshll.u32 [#allocation10], 4
      %s259 = int_to_ptr.vmem [resolvable:$true] %s258
      %261 = dma.vmem_to_hbm [thread:$0]  %s259, 256, %s4, [#allocation4]
    $region37: #{tpu_custom_call.1} parent=1 // pred_fallthru
      _
    // Predicated region
    $region38: #{tpu_custom_call.1} parent=1 // pred_check
      _
    $region39: #{tpu_custom_call.1} parent=1 // pred_check_branch
      %263 = sbr.rel (0) target = $region41
    $region40: #{tpu_custom_call.1} parent=1 // pred_region
      %264 = dma.done [#allocation4], 256
    $region41: #{tpu_custom_call.1} parent=1 // pred_fallthru
      _
    %265 = vsyncpa [#allocation3], 1
    %266 = vsyncpa [#allocation6], 1
    %267 = vsyncpa [#allocation9], 1
    %268 = vsyncpa [#allocation4], 1

</llo_original>
